<compile_context>
chip_gen: v5e
topology: v5e:2x2
jax: 0.10.0
libtpu: 0.0.40
codegen_flags: <defaults>
</compile_context>

<pallas_src>
import jax
import jax.numpy as jnp
from jax.experimental import pallas as pl
from jax.experimental.pallas import tpu as pltpu


def _mkgc_kernel(a_ref, xw_ref, b_ref, s_ref, out_ref):
    # (TM, N) @ (N, K*C_out) -> (TM, K*C_out), accumulated in f32 on the MXU.
    y = jnp.dot(a_ref[...], xw_ref[...], preferred_element_type=jnp.float32)
    # Bias (broadcast over rows) + ReLU on the VPU.
    r = jnp.maximum(y + b_ref[...], 0.0)
    # Sum the K per-kernel slices: (TM, K*C_out) @ (K*C_out, C_out).
    out_ref[...] = jnp.dot(r, s_ref[...], preferred_element_type=jnp.float32)


def mkgc_forward(a_hat, x, w, b, *, tm=None, matmul_dtype=jnp.float32):
    """a_hat: (N, N), x: (N, Cin), w: (K, Cin, Cout), b: (K, 1, Cout).

    matmul_dtype: dtype fed to the big A_hat matmul (jnp.bfloat16 recommended
    on v6e/v7x; accumulation stays f32 via preferred_element_type).
    """
    n = x.shape[0]
    k_num, c_in, c_out = w.shape
    kc = k_num * c_out

    # Batch the K weight matrices / biases into one wide operand.
    w_all = jnp.transpose(w, (1, 0, 2)).reshape(c_in, kc)          # (Cin, K*Cout)
    b_flat = b.reshape(1, kc).astype(jnp.float32)                  # (1, K*Cout)
    # Hoisted: XW_all computed once (small), only A_hat is streamed in-kernel.
    xw_all = jnp.dot(x, w_all, preferred_element_type=jnp.float32)  # (N, K*Cout)

    a_mm = a_hat.astype(matmul_dtype)
    xw_mm = xw_all.astype(matmul_dtype)
    # Selection matrix summing the K slices: stacked identities.
    sum_mat = jnp.tile(jnp.eye(c_out, dtype=jnp.float32), (k_num, 1))  # (K*Cout, Cout)

    # Row-tile size: multiple of 8 (sublane) or the full extent.
    if tm is None:
        tm = n if n <= 256 else 256
    if n % tm != 0 or (tm != n and tm % 8 != 0):
        tm = n  # fall back to a single full-row block for awkward N
    grid = (n // tm,)

    itemsize = jnp.dtype(matmul_dtype).itemsize
    cost = pl.CostEstimate(
        flops=2 * n * n * kc + 2 * n * kc * c_out,
        transcendentals=0,
        bytes_accessed=(n * n * itemsize          # A_hat
                        + n * kc * itemsize       # XW_all
                        + kc * 4                  # bias
                        + kc * c_out * 4          # selection matrix
                        + n * c_out * 4),         # output
    )

    return pl.pallas_call(
        _mkgc_kernel,
        out_shape=jax.ShapeDtypeStruct((n, c_out), jnp.float32),
        grid_spec=pltpu.PrefetchScalarGridSpec(
            num_scalar_prefetch=0,
            grid=grid,
            in_specs=[
                pl.BlockSpec((tm, n), lambda i: (i, 0)),       # A_hat row tile
                pl.BlockSpec((n, kc), lambda i: (0, 0)),       # XW_all (invariant)
                pl.BlockSpec((1, kc), lambda i: (0, 0)),       # bias   (invariant)
                pl.BlockSpec((kc, c_out), lambda i: (0, 0)),   # sum_mat (invariant)
            ],
            out_specs=pl.BlockSpec((tm, c_out), lambda i: (i, 0)),
        ),
        compiler_params=pltpu.CompilerParams(
            dimension_semantics=("parallel",),
            vmem_limit_bytes=64 * 1024 * 1024,
        ),
        cost_estimate=cost,
    )(a_mm, xw_mm, b_flat, sum_mat)


def build_normalized_adjacency(edge_index, num_nodes):
    """Dense D^{-1/2} (A + I) D^{-1/2} from edge_index (2, E), like PyG GCNConv."""
    src, dst = edge_index[0], edge_index[1]
    a = jnp.zeros((num_nodes, num_nodes), jnp.float32)
    a = a.at[dst, src].add(1.0)                       # message flows src -> dst
    a = a + jnp.eye(num_nodes, dtype=jnp.float32)     # add self loops
    deg = a.sum(axis=1)                               # target-side degree
    dinv = jnp.where(deg > 0, 1.0 / jnp.sqrt(deg), 0.0)
    return dinv[:, None] * a * dinv[None, :]


def mkgc_reference(a_hat, x, w, b):
    out = None
    for k in range(w.shape[0]):
        feat = a_hat @ (x @ w[k]) + b[k]
        r = jnp.maximum(feat, 0.0)
        out = r if out is None else out + r
    return out


if __name__ == "__main__":
    # Small, MKGC-consistent shapes: kernels=3, in_channel=8, out_channel=16,
    # graph with N=16 nodes.
    K, C_IN, C_OUT, N = 3, 8, 16, 16

    key = jax.random.PRNGKey(0)
    kx, kw, kb, ke = jax.random.split(key, 4)

    x = jax.random.normal(kx, (N, C_IN), dtype=jnp.float32)
    w = jax.random.normal(kw, (K, C_IN, C_OUT), dtype=jnp.float32) * (
        1.0 / jnp.sqrt(jnp.float32(C_IN)))
    b = jax.random.normal(kb, (K, 1, C_OUT), dtype=jnp.float32) * 0.01

    # Deterministic edge set: ring graph (both directions) + a few chords.
    src = jnp.concatenate([jnp.arange(N), jnp.arange(N), jnp.arange(0, N, 4)])
    dst = jnp.concatenate([(jnp.arange(N) + 1) % N,
                           (jnp.arange(N) - 1) % N,
                           (jnp.arange(0, N, 4) + N // 2) % N])
    edge_index = jnp.stack([src, dst]).astype(jnp.int32)

    a_hat = build_normalized_adjacency(edge_index, N)
    ref = mkgc_reference(a_hat, x, w, b)

    # f32 path, tm=8 -> grid of 2 row tiles (exercises the tiled pipeline).
    out = mkgc_forward(a_hat, x, w, b, tm=8, matmul_dtype=jnp.float32)
    out = jax.block_until_ready(out)
    assert out.shape == (N, C_OUT)
    assert jnp.allclose(out, ref, atol=1e-4, rtol=1e-4), "f32 mismatch vs reference"

    # bf16 MXU inputs (f32 accumulation), full-block tiles; looser tolerance.
    out_bf16 = mkgc_forward(a_hat, x, w, b, tm=N, matmul_dtype=jnp.bfloat16)
    out_bf16 = jax.block_until_ready(out_bf16)
    assert jnp.allclose(out_bf16, ref, atol=5e-2, rtol=5e-2), "bf16 mismatch vs reference"

    print("KERNEL_OK")
</pallas_src>

<mosaic_0001>
module attributes {stable_mosaic.version = 11 : i64} {
  func.func @_mkgc_kernel(%arg0: i32, %arg1: memref<8x16xf32, #tpu.memory_space<vmem>>, %arg2: memref<16x48xf32, #tpu.memory_space<vmem>>, %arg3: memref<1x48xf32, #tpu.memory_space<vmem>>, %arg4: memref<48x16xf32, #tpu.memory_space<vmem>>, %arg5: memref<8x16xf32, #tpu.memory_space<vmem>>) attributes {dimension_semantics = [#tpu.dimension_semantics<parallel>], iteration_bounds = array<i64: 2>, scalar_prefetch = 0 : i64, scratch_operands = 0 : i64, tpu.core_type = #tpu.core_type<tc>, window_params = [{transform_indices = @transform_0, window_bounds = array<i64: 8, 16>}, {pipeline_mode = #tpu.pipeline_mode<synchronous>, transform_indices = @transform_1, window_bounds = array<i64: 16, 48>}, {pipeline_mode = #tpu.pipeline_mode<synchronous>, transform_indices = @transform_2, window_bounds = array<i64: 1, 48>}, {pipeline_mode = #tpu.pipeline_mode<synchronous>, transform_indices = @transform_3, window_bounds = array<i64: 48, 16>}, {transform_indices = @transform_4, window_bounds = array<i64: 8, 16>}]} {
    %c0 = arith.constant 0 : index
    %c0_0 = arith.constant 0 : index
    %0 = vector.load %arg1[%c0, %c0_0] : memref<8x16xf32, #tpu.memory_space<vmem>>, vector<8x16xf32>
    %c0_1 = arith.constant 0 : index
    %c0_2 = arith.constant 0 : index
    %1 = vector.load %arg2[%c0_1, %c0_2] : memref<16x48xf32, #tpu.memory_space<vmem>>, vector<16x48xf32>
    %cst = arith.constant dense<0.000000e+00> : vector<8x48xf32>
    %2 = tpu.matmul %0, %1, %cst {dimension_numbers = #tpu.dot_dimension_numbers<[1], [0], [0], [1], [0, 0, 1, 1], [], []>} : vector<8x16xf32>, vector<16x48xf32>, vector<8x48xf32> -> vector<8x48xf32>
    %c0_3 = arith.constant 0 : index
    %c0_4 = arith.constant 0 : index
    %3 = vector.load %arg3[%c0_3, %c0_4] : memref<1x48xf32, #tpu.memory_space<vmem>>, vector<1x48xf32>
    %4 = vector.broadcast %3 : vector<1x48xf32> to vector<8x48xf32>
    %5 = arith.addf %2, %4 : vector<8x48xf32>
    %cst_5 = arith.constant 0.000000e+00 : f32
    %6 = vector.broadcast %cst_5 : f32 to vector<8x48xf32>
    %7 = arith.maximumf %5, %6 : vector<8x48xf32>
    %c0_6 = arith.constant 0 : index
    %c0_7 = arith.constant 0 : index
    %8 = vector.load %arg4[%c0_6, %c0_7] : memref<48x16xf32, #tpu.memory_space<vmem>>, vector<48x16xf32>
    %cst_8 = arith.constant dense<0.000000e+00> : vector<8x16xf32>
    %9 = tpu.matmul %7, %8, %cst_8 {dimension_numbers = #tpu.dot_dimension_numbers<[1], [0], [0], [1], [0, 0, 1, 1], [], []>} : vector<8x48xf32>, vector<48x16xf32>, vector<8x16xf32> -> vector<8x16xf32>
    %c0_9 = arith.constant 0 : index
    %c0_10 = arith.constant 0 : index
    %10 = vector.load %arg5[%c0_9, %c0_10] : memref<8x16xf32, #tpu.memory_space<vmem>>, vector<8x16xf32>
    tpu.vector_store %arg5[%c0_9, %c0_10], %9 {strides = array<i32>} : memref<8x16xf32, #tpu.memory_space<vmem>>, vector<8x16xf32>,
    return
  }
  func.func @transform_0(%arg0: i32) -> (i32, i32) {
    %c0_i32 = arith.constant 0 : i32
    %c0_i32_0 = arith.constant 0 : i32
    return %arg0, %c0_i32 : i32, i32
  }
  func.func @transform_1(%arg0: i32) -> (i32, i32) {
    %c0_i32 = arith.constant 0 : i32
    %c0_i32_0 = arith.constant 0 : i32
    %c0_i32_1 = arith.constant 0 : i32
    return %c0_i32, %c0_i32_0 : i32, i32
  }
  func.func @transform_2(%arg0: i32) -> (i32, i32) {
    %c0_i32 = arith.constant 0 : i32
    %c0_i32_0 = arith.constant 0 : i32
    %c0_i32_1 = arith.constant 0 : i32
    return %c0_i32, %c0_i32_0 : i32, i32
  }
  func.func @transform_3(%arg0: i32) -> (i32, i32) {
    %c0_i32 = arith.constant 0 : i32
    %c0_i32_0 = arith.constant 0 : i32
    %c0_i32_1 = arith.constant 0 : i32
    return %c0_i32, %c0_i32_0 : i32, i32
  }
  func.func @transform_4(%arg0: i32) -> (i32, i32) {
    %c0_i32 = arith.constant 0 : i32
    %c0_i32_0 = arith.constant 0 : i32
    return %arg0, %c0_i32 : i32, i32
  }
}

</mosaic_0001>

<llo_original>
// kernel: tpu_custom_call.1
$region0: #{tpu_custom_call.1}
  #allocation0 [shape = 'u32[]', space=smem, size = 0x4, offset = 0x4, fixed_abs, tag = 'smem constant byte address 0x4 - core index']
  #allocation1 [shape = 'u32[72,128]{1,0:T(1,128)}', space=vmem, size = 0x9000, scoped, tag = 'internal scratch']
  %s0 = inlined_call_operand.vmem [shape: f32[16,16], index: 0, kind: input, shape index: {}]
  %s1 = inlined_call_operand.vmem [shape: f32[16,48], index: 1, kind: input, shape index: {}]
  %s2 = inlined_call_operand.vmem [shape: f32[1,48], index: 2, kind: input, shape index: {}]
  %s3 = inlined_call_operand.vmem [shape: f32[48,16], index: 3, kind: input, shape index: {}]
  %s4 = inlined_call_operand.hbm [shape: f32[16,16], index: 4, kind: output, shape index: {}]
  %s5 = sld [smem:[#allocation0]]
  $region49: #{tpu_custom_call.1} parent=0
    _
  %s7 = ssub.s32 1, %s5
  %s8 = scalar_select 0, %s7, %s5
  $region1: #{tpu_custom_call.1} parent=0
    #allocation2 [shape = 'u8[8192]{0}', space=vmem, size = 0x2000, scoped, tag = 'output window, operand 0']
    #allocation3 [shape = 's32[2]{0}', space=sflag, size = 0x8, scoped, tag = 'scoped memory for tpu_custom_call.1']
    %9 = vsyncpa [#allocation3], 0
    %s10 = scalar_lea.sflag [#allocation3], 1
    %11 = vsyncpa %s10, 0
    loop: start=0, step=1, limit=4
    $region2: #{tpu_custom_call.1} parent=1 // loop_pre_header
      _
    $region3: #{tpu_custom_call.1} parent=1 // loop_header
      %s13 = sphi 0, %s17
      %p14 = scmp.ge.s32.totalorder %s13, 4
      %s23 = sphi 0, %s25
      %s26 = sphi 0, %s23
      %s27 = sphi 0, %s26
      %s43 = sphi 0, %s27
      %s47 = sphi 0, %s47
      %s49 = sphi 0, %s47
      %s50 = sphi 0, %s49
      %s64 = sphi 0, %s50
      %s68 = sphi 0, %s68
      %s70 = sphi 0, %s68
      %s71 = sphi 0, %s70
      %s85 = sphi 0, %s71
      %s89 = sphi 0, %s89
      %s91 = sphi 0, %s89
      %s92 = sphi 0, %s91
      %s106 = sphi 0, %s92
      %s112 = sphi 0, %s114
      %s115 = sphi 0, %s112
      %s116 = sphi 0, %s115
      %s132 = sphi 0, %s116
    $region4: #{tpu_custom_call.1} parent=1 // loop_header_branch
      %16 = sbr.rel (%p14) target = $region8
    $region5: #{tpu_custom_call.1} parent=1 // loop_body
      %s18 = ssub.s32 %s13, 1
      %s19 = ssub.s32 %s13, 2
      %s20 = sadd.s32 %s13, 1
      %s21 = ssub.s32 %s13, %s20
      %p22 = scmp.eq.s32.totalorder %s21, 0
      %s24 = sadd.s32 %s23, 1
      %s25 = scalar_select %p22, %s23, %s24
      %p28 = pneg %p22
      %p29 = scmp.eq.s32.totalorder %s13, 1
      %p30 = por %p28, %p29
      %p31 = scmp.ne.s32.totalorder %s23, %s26
      %p32 = scmp.eq.s32.totalorder %s13, 0
      %p33 = por %p31, %p32
      %p34 = scmp.ne.s32.totalorder %s23, %s26
      %p35 = scmp.eq.s32.totalorder %s18, 1
      %p36 = por %p34, %p35
      %p37 = scmp.ne.s32.totalorder %s26, %s27
      %p38 = scmp.eq.s32.totalorder %s18, 0
      %p39 = por %p37, %p38
      %p40 = scmp.ne.s32.totalorder %s26, %s27
      %p41 = scmp.eq.s32.totalorder %s19, 1
      %p42 = por %p40, %p41
      %p44 = scmp.ne.s32.totalorder %s27, %s43
      %p45 = scmp.eq.s32.totalorder %s19, 0
      %p46 = por %p44, %p45
      %s48 = sadd.s32 %s47, 1
      %p51 = scmp.eq.s32.totalorder %s13, 1
      %p52 = scmp.ne.s32.totalorder %s47, %s49
      %p53 = scmp.eq.s32.totalorder %s13, 0
      %p54 = por %p52, %p53
      %p55 = scmp.ne.s32.totalorder %s47, %s49
      %p56 = scmp.eq.s32.totalorder %s18, 1
      %p57 = por %p55, %p56
      %p58 = scmp.ne.s32.totalorder %s49, %s50
      %p59 = scmp.eq.s32.totalorder %s18, 0
      %p60 = por %p58, %p59
      %p61 = scmp.ne.s32.totalorder %s49, %s50
      %p62 = scmp.eq.s32.totalorder %s19, 1
      %p63 = por %p61, %p62
      %p65 = scmp.ne.s32.totalorder %s50, %s64
      %p66 = scmp.eq.s32.totalorder %s19, 0
      %p67 = por %p65, %p66
      %s69 = sadd.s32 %s68, 1
      %p72 = scmp.eq.s32.totalorder %s13, 1
      %p73 = scmp.ne.s32.totalorder %s68, %s70
      %p74 = scmp.eq.s32.totalorder %s13, 0
      %p75 = por %p73, %p74
      %p76 = scmp.ne.s32.totalorder %s68, %s70
      %p77 = scmp.eq.s32.totalorder %s18, 1
      %p78 = por %p76, %p77
      %p79 = scmp.ne.s32.totalorder %s70, %s71
      %p80 = scmp.eq.s32.totalorder %s18, 0
      %p81 = por %p79, %p80
      %p82 = scmp.ne.s32.totalorder %s70, %s71
      %p83 = scmp.eq.s32.totalorder %s19, 1
      %p84 = por %p82, %p83
      %p86 = scmp.ne.s32.totalorder %s71, %s85
      %p87 = scmp.eq.s32.totalorder %s19, 0
      %p88 = por %p86, %p87
      %s90 = sadd.s32 %s89, 1
      %p93 = scmp.eq.s32.totalorder %s13, 1
      %p94 = scmp.ne.s32.totalorder %s89, %s91
      %p95 = scmp.eq.s32.totalorder %s13, 0
      %p96 = por %p94, %p95
      %p97 = scmp.ne.s32.totalorder %s89, %s91
      %p98 = scmp.eq.s32.totalorder %s18, 1
      %p99 = por %p97, %p98
      %p100 = scmp.ne.s32.totalorder %s91, %s92
      %p101 = scmp.eq.s32.totalorder %s18, 0
      %p102 = por %p100, %p101
      %p103 = scmp.ne.s32.totalorder %s91, %s92
      %p104 = scmp.eq.s32.totalorder %s19, 1
      %p105 = por %p103, %p104
      %p107 = scmp.ne.s32.totalorder %s92, %s106
      %p108 = scmp.eq.s32.totalorder %s19, 0
      %p109 = por %p107, %p108
      %s110 = ssub.s32 %s13, %s20
      %p111 = scmp.eq.s32.totalorder %s110, 0
      %s113 = sadd.s32 %s112, 1
      %s114 = scalar_select %p111, %s112, %s113
      %p117 = pneg %p111
      %p118 = scmp.eq.s32.totalorder %s13, 1
      %p119 = por %p117, %p118
      %p120 = scmp.ne.s32.totalorder %s112, %s115
      %p121 = scmp.eq.s32.totalorder %s13, 0
      %p122 = por %p120, %p121
      %p123 = scmp.ne.s32.totalorder %s112, %s115
      %p124 = scmp.eq.s32.totalorder %s18, 1
      %p125 = por %p123, %p124
      %p126 = scmp.ne.s32.totalorder %s115, %s116
      %p127 = scmp.eq.s32.totalorder %s18, 0
      %p128 = por %p126, %p127
      %p129 = scmp.ne.s32.totalorder %s115, %s116
      %p130 = scmp.eq.s32.totalorder %s19, 1
      %p131 = por %p129, %p130
      %p133 = scmp.ne.s32.totalorder %s116, %s132
      %p134 = scmp.eq.s32.totalorder %s19, 0
      %p135 = por %p133, %p134
      %p136 = scmp.le.s32.totalorder 1, %s13
      %p137 = scmp.lt.s32.totalorder %s13, 3
      %p138 = pnand %p136, %p137
      %p139 = pneg %p138
      // Predicated region
      $region9: #{tpu_custom_call.1} parent=5 // pred_check
        _
      $region10: #{tpu_custom_call.1} parent=5 // pred_check_branch
        %141 = sbr.rel (%p138) target = $region12
      $region11: #{tpu_custom_call.1} parent=5 // pred_region
        %s142 = ssub.s32 %s13, 1
        // Predicated region
        $region13: #{tpu_custom_call.1} parent=11 // pred_check
          %p143 = pneg %p60
        $region14: #{tpu_custom_call.1} parent=11 // pred_check_branch
          %145 = sbr.rel (%p143) target = $region16
        $region15: #{tpu_custom_call.1} parent=11 // pred_region
          _
        $region16: #{tpu_custom_call.1} parent=11 // pred_fallthru
          _
        // Predicated region
        $region17: #{tpu_custom_call.1} parent=11 // pred_check
          %p146 = pneg %p81
        $region18: #{tpu_custom_call.1} parent=11 // pred_check_branch
          %148 = sbr.rel (%p146) target = $region20
        $region19: #{tpu_custom_call.1} parent=11 // pred_region
          _
        $region20: #{tpu_custom_call.1} parent=11 // pred_fallthru
          _
        // Predicated region
        $region21: #{tpu_custom_call.1} parent=11 // pred_check
          %p149 = pneg %p102
        $region22: #{tpu_custom_call.1} parent=11 // pred_check_branch
          %151 = sbr.rel (%p149) target = $region24
        $region23: #{tpu_custom_call.1} parent=11 // pred_region
          _
        $region24: #{tpu_custom_call.1} parent=11 // pred_fallthru
          _
      $region12: #{tpu_custom_call.1} parent=5 // pred_fallthru
        _
      %p152 = scmp.lt.s32.totalorder %s13, 2
      // Predicated region
      $region25: #{tpu_custom_call.1} parent=5 // pred_check
        %p153 = pneg %p152
      $region26: #{tpu_custom_call.1} parent=5 // pred_check_branch
        %155 = sbr.rel (%p153) target = $region28
      $region27: #{tpu_custom_call.1} parent=5 // pred_region
        // Predicated region
        $region29: #{tpu_custom_call.1} parent=27 // pred_check
          %p156 = pneg %p33
        $region30: #{tpu_custom_call.1} parent=27 // pred_check_branch
          %158 = sbr.rel (%p156) target = $region32
        $region31: #{tpu_custom_call.1} parent=27 // pred_region
          %p159 = scmp.lt.s32.totalorder %s13, 1
          %s160 = scalar_select %p159, %s13, 1
          %s161 = smul.addr %s160, 8
          %s162 = scalar_lea.vmem %s0, %s161
        $region32: #{tpu_custom_call.1} parent=27 // pred_fallthru
          _
      $region28: #{tpu_custom_call.1} parent=5 // pred_fallthru
        _
      %p163 = scmp.le.s32.totalorder 1, %s13
      %p164 = scmp.lt.s32.totalorder %s13, 3
      %p165 = pnand %p163, %p164
      %p166 = pneg %p165
      // Predicated region
      $region33: #{tpu_custom_call.1} parent=5 // pred_check
        _
      $region34: #{tpu_custom_call.1} parent=5 // pred_check_branch
        %168 = sbr.rel (%p165) target = $region36
      $region35: #{tpu_custom_call.1} parent=5 // pred_region
        %s169 = ssub.s32 %s13, 1
        %p170 = scmp.lt.s32.totalorder %s18, 1
        %s171 = scalar_select %p170, %s18, 1
        %s172 = smul.addr %s171, 8
        %s173 = scalar_lea.vmem %s0, %s172
        %p174 = pneg %p39
        %p175 = pneg %p36
        %p176 = pneg %p60
        %p177 = pneg %p57
        %p178 = pneg %p81
        %p179 = pneg %p78
        %p180 = pneg %p102
        %p181 = pneg %p99
        %p182 = pneg %p128
        %p183 = pneg %p125
        %s184 = sand.u32 %s115, 1
        %s185 = scalar_lea.sflag [#allocation3], %s184
        %s186 = sand.u32 %s115, 1
        %s187 = smul.addr %s186, 8
        %s188 = scalar_lea.vmem [#allocation2], %s187
        %p189 = scmp.lt.s32.totalorder %s18, 1
        %s190 = scalar_select %p189, %s18, 1
        %s191 = smul.addr %s190, 8
        %s192 = scalar_lea.vmem %s0, %s191
        %v193 = vld [vmem:[%s192] sm:$0xff]
        %v194 = vld [vmem:[%s1] sm:$0xff]
        %v195 = vld [vmem:[%s1 + $0x8] sm:$0xff]
        %v196 = vld [vmem:[%s2] sm:$0x1]
        %v198 = vperm.slane %v196, 0
        %vm200 = vcmask 130048
        %v202 = vsel %vm200, %v193, 0
        %204 = vmatpush.msra.mxu0 0.0
        %205 = vmatpush.msra.mxu0 0.0
        %206 = vmatpush.msra.mxu0 0.0
        %207 = vmatpush.msra.mxu0 0.0
        %208 = vmatpush.msra.mxu0 0.0
        %209 = vmatpush.msra.mxu0 0.0
        %210 = vmatpush.msra.mxu0 0.0
        %211 = vmatpush.msra.mxu0 0.0
        %212 = vmatpush.msra.mxu0 0.0
        %213 = vmatpush.msra.mxu0 0.0
        %214 = vmatpush.msra.mxu0 0.0
        %215 = vmatpush.msra.mxu0 0.0
        %216 = vmatpush.msra.mxu0 0.0
        %217 = vmatpush.msra.mxu0 0.0
        %218 = vmatpush.msra.mxu0 %v195
        %219 = vmatpush.msra.mxu0 %v194
        %220 = vmatmul.f32.gmra.mxu0 %v202
        %v221 = vpop.f32.mrf.mxu0
        %v222 = vadd.f32 %v198, %v221
        %223 = vdwg.mxu0
        %v224 = vmax.f32 %v222, 0.0
        %v225 = vld [vmem:[%s3] sm:$0xff]
        %v226 = vld [vmem:[%s3 + $0x8] sm:$0xff]
        %v227 = vld [vmem:[%s3 + $0x10] sm:$0xff]
        %v228 = vld [vmem:[%s3 + $0x18] sm:$0xff]
        %v229 = vld [vmem:[%s3 + $0x20] sm:$0xff]
        %v230 = vld [vmem:[%s3 + $0x28] sm:$0xff]
        %vm231 = vcmask 392192
        %v233 = vsel %vm231, %v224, 0
        %235 = vmatpush.msra.mxu0 0.0
        %236 = vmatpush.msra.mxu0 0.0
        %237 = vmatpush.msra.mxu0 0.0
        %238 = vmatpush.msra.mxu0 0.0
        %239 = vmatpush.msra.mxu0 0.0
        %240 = vmatpush.msra.mxu0 0.0
        %241 = vmatpush.msra.mxu0 0.0
        %242 = vmatpush.msra.mxu0 0.0
        %243 = vmatpush.msra.mxu0 0.0
        %244 = vmatpush.msra.mxu0 0.0
        %245 = vmatpush.msra.mxu0 %v230
        %246 = vmatpush.msra.mxu0 %v229
        %247 = vmatpush.msra.mxu0 %v228
        %248 = vmatpush.msra.mxu0 %v227
        %249 = vmatpush.msra.mxu0 %v226
        %250 = vmatpush.msra.mxu0 %v225
        %251 = vmatmul.f32.gmra.mxu0 %v233
        %v252 = vpop.f32.mrf.mxu0
        %v253 = vadd.f32 0.0, %v252
        %254 = vdwg.mxu0
        %255 = vst.msk [vmem:[%s188] sm:$0xff] %vm200, %v253
        %s256 = sand.u32 %s115, 1
        %s257 = scalar_lea.sflag [#allocation3], %s256
        %s258 = sand.u32 %s115, 1
        %s259 = smul.addr %s258, 8
        %s260 = scalar_lea.vmem [#allocation2], %s259
        // Predicated region
        $region37: #{tpu_custom_call.1} parent=35 // pred_check
          %p261 = pneg %p125
        $region38: #{tpu_custom_call.1} parent=35 // pred_check_branch
          %263 = sbr.rel (%p261) target = $region40
        $region39: #{tpu_custom_call.1} parent=35 // pred_region
          %265 = vsyncadd %s257, 0
          %s266 = smul.addr %s18, 8
          %s267 = scalar_lea.hbm %s4, %s266
          %s269 = sshll.u32 %s260, 4
          %s270 = int_to_ptr.vmem [resolvable:$true] %s269
          %s271 = sshll.u32 %s267, 4
          %s272 = int_to_ptr.hbm [resolvable:$true] %s271
          %274 = dma.vmem_to_hbm [thread:$0]  %s270, 128, %s272, %s257
        $region40: #{tpu_custom_call.1} parent=35 // pred_fallthru
          _
      $region36: #{tpu_custom_call.1} parent=5 // pred_fallthru
        _
      %p275 = scmp.le.s32.totalorder 2, %s13
      // Predicated region
      $region41: #{tpu_custom_call.1} parent=5 // pred_check
        %p276 = pneg %p275
      $region42: #{tpu_custom_call.1} parent=5 // pred_check_branch
        %278 = sbr.rel (%p276) target = $region44
      $region43: #{tpu_custom_call.1} parent=5 // pred_region
        %s279 = ssub.s32 %s13, 2
        // Predicated region
        $region45: #{tpu_custom_call.1} parent=43 // pred_check
          %p280 = pneg %p131
        $region46: #{tpu_custom_call.1} parent=43 // pred_check_branch
          %282 = sbr.rel (%p280) target = $region48
        $region47: #{tpu_custom_call.1} parent=43 // pred_region
          %s283 = sand.u32 %s116, 1
          %s284 = scalar_lea.sflag [#allocation3], %s283
          %s285 = sand.u32 %s116, 1
          %s286 = smul.addr %s285, 8
          %s287 = scalar_lea.vmem [#allocation2], %s286
          %289 = dma.done %s284, 128
        $region48: #{tpu_custom_call.1} parent=43 // pred_fallthru
          _
      $region44: #{tpu_custom_call.1} parent=5 // pred_fallthru
        _
    $region6: #{tpu_custom_call.1} parent=1 // loop_footer
      %s17 = sadd.s32 1, %s13
    $region7: #{tpu_custom_call.1} parent=1 // loop_footer_branch
      %12 = sbr.rel target = $region3
    $region8: #{tpu_custom_call.1} parent=1 // loop_exit
      _
    %290 = vsyncpa [#allocation3], 1
    %s291 = scalar_lea.sflag [#allocation3], 1
    %292 = vsyncpa %s291, 1

</llo_original>
